<compile_context>
chip_gen: v7x
topology: tpu7x:2x2x1
jax: 0.10.0
libtpu: 0.0.40
codegen_flags: <defaults>
</compile_context>

<pallas_src>
import numpy as np
import jax
import jax.numpy as jnp
from jax import lax
from jax.experimental import pallas as pl
from jax.experimental.pallas import tpu as pltpu


_MAX_TILE = 4096   # VMEM-safe everywhere; >=2048 already ~99% pipeline-efficient.


def _round_up(x, m):
    return ((x + m - 1) // m) * m


def _default_tile(n):
    """Batch tile: single tile for tiny N; otherwise 128-multiples with >= 2
    grid steps (v7x megacore) and a hard cap for VMEM safety."""
    if n < 256:
        return max(8, _round_up(n, 8))
    steps = max(2, n // 4096)
    return min(_MAX_TILE, max(128, _round_up(pl.cdiv(n, steps), 128)))


def _make_mlp_kernel(compute_dtype):
    def kernel(x_ref, w1_ref, wm_ref, w5_ref, bh_ref, b5_ref, o_ref):
        cd = compute_dtype
        x = x_ref[...].astype(cd)                       # (Nt, D_in) native layout
        # Layer 1: contract x's last axis -> lane-dense (H, Nt) activation.
        h = lax.dot_general(w1_ref[...].astype(cd), x,
                            (((1,), (1,)), ((), ())),
                            preferred_element_type=jnp.float32)
        h = jnp.tanh((h + bh_ref[0]).astype(cd))
        # Layers 2..4: (H,H) @ (H,Nt) -> (H,Nt); bias broadcasts along lanes.
        for l in range(3):
            h = jnp.dot(wm_ref[l].astype(cd), h,
                        preferred_element_type=jnp.float32)
            h = jnp.tanh((h + bh_ref[l + 1]).astype(cd))
        # Layer 5: contract h's first axis with w5's last -> (Nt, D_out) directly,
        # so the output is stored in native (N, D_out) layout (no transposes).
        y = lax.dot_general(h, w5_ref[...].astype(cd),
                            (((0,), (1,)), ((), ())),
                            preferred_element_type=jnp.float32)
        o_ref[...] = (y + b5_ref[...]).astype(o_ref.dtype)
    return kernel


def prepare_particular_params(params, a1):
    """One-time, host-side parameter prep (call once, reuse across forwards).

    Folds s = n*a1 = (1/a1)*a1 into all weights/biases (algebraically identical
    to applying it post-matmul as the PyTorch module does) and packs the middle
    weights / hidden biases so the kernel takes only 6 operands.
    """
    s = np.float32(np.float32(1.0) / np.float32(a1)) * np.float32(a1)

    def f(a):
        return s * np.asarray(a, dtype=np.float32)

    H = params["w1"].shape[0]
    D_out = params["w5"].shape[0]
    return {
        "w1": jnp.asarray(f(params["w1"])),                                # (H, D_in)
        "wm": jnp.asarray(np.stack([f(params["w2"]), f(params["w3"]),
                                    f(params["w4"])])),                    # (3, H, H)
        "w5": jnp.asarray(f(params["w5"])),                                # (D_out, H)
        "bh": jnp.asarray(np.stack([f(params["b1"]), f(params["b2"]),
                                    f(params["b3"]), f(params["b4"])]
                                   ).reshape(4, H, 1)),                    # (4, H, 1)
        "b5": jnp.asarray(f(params["b5"]).reshape(1, D_out)),              # (1, D_out)
    }


def particular_forward(x, folded, *, tile_batch=None, use_bf16=False):
    """Pallas forward of `particular`.

    x:      (N, D_in) float32 (native layout, kept as-is in HBM)
    folded: output of prepare_particular_params (scale already folded in)
    """
    N, D_in = x.shape
    H = folded["w1"].shape[0]
    D_out = folded["w5"].shape[0]

    if tile_batch is None:
        tile_batch = _default_tile(N)
    tile_batch = max(8, _round_up(min(int(tile_batch), _MAX_TILE), 8))

    n_steps = pl.cdiv(N, tile_batch)
    n_pad = n_steps * tile_batch
    xp = jnp.pad(x, ((0, n_pad - N), (0, 0))) if n_pad != N else x

    kernel = _make_mlp_kernel(jnp.bfloat16 if use_bf16 else jnp.float32)

    in_specs = [
        pl.BlockSpec((tile_batch, D_in), lambda i: (i, 0)),   # x tile, native layout
        pl.BlockSpec((H, D_in), lambda i: (0, 0)),            # w1
        pl.BlockSpec((3, H, H), lambda i: (0, 0, 0)),         # w2..w4 packed
        pl.BlockSpec((D_out, H), lambda i: (0, 0)),           # w5
        pl.BlockSpec((4, H, 1), lambda i: (0, 0, 0)),         # b1..b4 packed
        pl.BlockSpec((1, D_out), lambda i: (0, 0)),           # b5
    ]
    out_spec = pl.BlockSpec((tile_batch, D_out), lambda i: (i, 0))

    fn = pl.pallas_call(
        kernel,
        out_shape=jax.ShapeDtypeStruct((n_pad, D_out), jnp.float32),
        grid_spec=pltpu.PrefetchScalarGridSpec(
            num_scalar_prefetch=0,
            grid=(n_steps,),
            in_specs=in_specs,
            out_specs=out_spec,
        ),
        compiler_params=pltpu.CompilerParams(
            dimension_semantics=("parallel",)),
    )
    y = fn(xp, folded["w1"], folded["wm"], folded["w5"],
           folded["bh"], folded["b5"])
    return y[:N] if n_pad != N else y


def init_params(key, D_in, H, D_out):
    """Deterministic init mirroring the PyTorch module's normal_ inits.
    Weights kept in PyTorch-native (out, in) layout; biases 1-D (out,)."""
    ks = jax.random.split(key, 10)

    def normal(k, shape, std):
        return (std * jax.random.normal(k, shape)).astype(jnp.float32)

    return {
        "w1": normal(ks[0], (H, D_in),  np.sqrt(2.0 / (D_in + H))),
        "w2": normal(ks[1], (H, H),     np.sqrt(2.0 / (H + H))),
        "w3": normal(ks[2], (H, H),     np.sqrt(2.0 / (H + H))),
        "w4": normal(ks[3], (H, H),     np.sqrt(2.0 / (H + H))),
        "w5": normal(ks[4], (D_out, H), np.sqrt(2.0 / (H + D_out))),
        "b1": normal(ks[5], (H,), 1.0),
        "b2": normal(ks[6], (H,), 1.0),
        "b3": normal(ks[7], (H,), 1.0),
        "b4": normal(ks[8], (H,), 1.0),
        "b5": normal(ks[9], (D_out,), 1.0),
    }


def reference_forward(x, params, a1):
    s = (jnp.float32(1.0) / jnp.float32(a1)) * jnp.float32(a1)
    h = jnp.tanh(s * (x @ params["w1"].T + params["b1"]))
    h = jnp.tanh(s * (h @ params["w2"].T + params["b2"]))
    h = jnp.tanh(s * (h @ params["w3"].T + params["b3"]))
    h = jnp.tanh(s * (h @ params["w4"].T + params["b4"]))
    return s * (h @ params["w5"].T + params["b5"])


if __name__ == "__main__":
    # Shapes implied by the module: (N, D_in) collocation points (2-D coords),
    # hidden width H=32, output D_out=2.
    D_in, H, D_out = 2, 32, 2
    a1 = 0.1

    key = jax.random.PRNGKey(0)
    kx, kp = jax.random.split(key)
    params = init_params(kp, D_in, H, D_out)
    folded = prepare_particular_params(params, a1)   # one-time prep

    # Case 1: small batch, single tile (grid = 1).
    N = 64
    x = jax.random.normal(kx, (N, D_in), dtype=jnp.float32)
    y = jax.block_until_ready(particular_forward(x, folded, a1=None if False else None)
                              if False else particular_forward(x, folded))
    np.testing.assert_allclose(np.asarray(y),
                               np.asarray(reference_forward(x, params, a1)),
                               rtol=1e-5, atol=1e-5)

    # Case 2: non-divisible batch exercising padding + a multi-step parallel grid.
    N2 = 300
    x2 = jax.random.normal(kx, (N2, D_in), dtype=jnp.float32)
    y2 = jax.block_until_ready(particular_forward(x2, folded))
    np.testing.assert_allclose(np.asarray(y2),
                               np.asarray(reference_forward(x2, params, a1)),
                               rtol=1e-5, atol=1e-5)

    # Case 3: explicit 128-row tiles (grid = 4).
    N3 = 512
    x3 = jax.random.normal(kx, (N3, D_in), dtype=jnp.float32)
    y3 = jax.block_until_ready(particular_forward(x3, folded, tile_batch=128))
    np.testing.assert_allclose(np.asarray(y3),
                               np.asarray(reference_forward(x3, params, a1)),
                               rtol=1e-5, atol=1e-5)

    print("KERNEL_OK")
</pallas_src>

<mosaic_0001>
module attributes {stable_mosaic.version = 11 : i64} {
  func.func @kernel(%arg0: i32, %arg1: memref<64x2xf32, #tpu.memory_space<vmem>>, %arg2: memref<32x2xf32, #tpu.memory_space<vmem>>, %arg3: memref<3x32x32xf32, #tpu.memory_space<vmem>>, %arg4: memref<2x32xf32, #tpu.memory_space<vmem>>, %arg5: memref<4x32x1xf32, #tpu.memory_space<vmem>>, %arg6: memref<1x2xf32, #tpu.memory_space<vmem>>, %arg7: memref<64x2xf32, #tpu.memory_space<vmem>>) attributes {dimension_semantics = [#tpu.dimension_semantics<parallel>], iteration_bounds = array<i64: 1>, scalar_prefetch = 0 : i64, scratch_operands = 0 : i64, tpu.core_type = #tpu.core_type<tc>, window_params = [{transform_indices = @transform_0, window_bounds = array<i64: 64, 2>}, {pipeline_mode = #tpu.pipeline_mode<synchronous>, transform_indices = @transform_1, window_bounds = array<i64: 32, 2>}, {pipeline_mode = #tpu.pipeline_mode<synchronous>, transform_indices = @transform_2, window_bounds = array<i64: 3, 32, 32>}, {pipeline_mode = #tpu.pipeline_mode<synchronous>, transform_indices = @transform_3, window_bounds = array<i64: 2, 32>}, {pipeline_mode = #tpu.pipeline_mode<synchronous>, transform_indices = @transform_4, window_bounds = array<i64: 4, 32, 1>}, {pipeline_mode = #tpu.pipeline_mode<synchronous>, transform_indices = @transform_5, window_bounds = array<i64: 1, 2>}, {transform_indices = @transform_6, window_bounds = array<i64: 64, 2>}]} {
    %c0 = arith.constant 0 : index
    %c0_0 = arith.constant 0 : index
    %0 = vector.load %arg1[%c0, %c0_0] : memref<64x2xf32, #tpu.memory_space<vmem>>, vector<64x2xf32>
    %c0_1 = arith.constant 0 : index
    %c0_2 = arith.constant 0 : index
    %1 = vector.load %arg2[%c0_1, %c0_2] : memref<32x2xf32, #tpu.memory_space<vmem>>, vector<32x2xf32>
    %cst = arith.constant dense<0.000000e+00> : vector<32x64xf32>
    %2 = tpu.matmul %1, %0, %cst {dimension_numbers = #tpu.dot_dimension_numbers<[1], [1], [0], [0], [0, 0, 1, 0], [], []>} : vector<32x2xf32>, vector<64x2xf32>, vector<32x64xf32> -> vector<32x64xf32>
    %c0_3 = arith.constant 0 : index
    %c0_4 = arith.constant 0 : index
    %c0_5 = arith.constant 0 : index
    %3 = vector.load %arg5[%c0_3, %c0_4, %c0_5] : memref<4x32x1xf32, #tpu.memory_space<vmem>>, vector<1x32x1xf32>
    %4 = vector.shape_cast %3 : vector<1x32x1xf32> to vector<32x1xf32>
    %5 = vector.broadcast %4 : vector<32x1xf32> to vector<32x64xf32>
    %6 = arith.addf %2, %5 : vector<32x64xf32>
    %7 = math.tanh %6 : vector<32x64xf32>
    %c0_6 = arith.constant 0 : index
    %c0_7 = arith.constant 0 : index
    %c0_8 = arith.constant 0 : index
    %8 = vector.load %arg3[%c0_6, %c0_7, %c0_8] : memref<3x32x32xf32, #tpu.memory_space<vmem>>, vector<1x32x32xf32>
    %9 = vector.shape_cast %8 : vector<1x32x32xf32> to vector<32x32xf32>
    %cst_9 = arith.constant dense<0.000000e+00> : vector<32x64xf32>
    %10 = tpu.matmul %9, %7, %cst_9 {dimension_numbers = #tpu.dot_dimension_numbers<[1], [0], [0], [1], [0, 0, 1, 1], [], []>} : vector<32x32xf32>, vector<32x64xf32>, vector<32x64xf32> -> vector<32x64xf32>
    %c1 = arith.constant 1 : index
    %c0_10 = arith.constant 0 : index
    %c0_11 = arith.constant 0 : index
    %11 = vector.load %arg5[%c1, %c0_10, %c0_11] : memref<4x32x1xf32, #tpu.memory_space<vmem>>, vector<1x32x1xf32>
    %12 = vector.shape_cast %11 : vector<1x32x1xf32> to vector<32x1xf32>
    %13 = vector.broadcast %12 : vector<32x1xf32> to vector<32x64xf32>
    %14 = arith.addf %10, %13 : vector<32x64xf32>
    %15 = math.tanh %14 : vector<32x64xf32>
    %c1_12 = arith.constant 1 : index
    %c0_13 = arith.constant 0 : index
    %c0_14 = arith.constant 0 : index
    %16 = vector.load %arg3[%c1_12, %c0_13, %c0_14] : memref<3x32x32xf32, #tpu.memory_space<vmem>>, vector<1x32x32xf32>
    %17 = vector.shape_cast %16 : vector<1x32x32xf32> to vector<32x32xf32>
    %cst_15 = arith.constant dense<0.000000e+00> : vector<32x64xf32>
    %18 = tpu.matmul %17, %15, %cst_15 {dimension_numbers = #tpu.dot_dimension_numbers<[1], [0], [0], [1], [0, 0, 1, 1], [], []>} : vector<32x32xf32>, vector<32x64xf32>, vector<32x64xf32> -> vector<32x64xf32>
    %c2 = arith.constant 2 : index
    %c0_16 = arith.constant 0 : index
    %c0_17 = arith.constant 0 : index
    %19 = vector.load %arg5[%c2, %c0_16, %c0_17] : memref<4x32x1xf32, #tpu.memory_space<vmem>>, vector<1x32x1xf32>
    %20 = vector.shape_cast %19 : vector<1x32x1xf32> to vector<32x1xf32>
    %21 = vector.broadcast %20 : vector<32x1xf32> to vector<32x64xf32>
    %22 = arith.addf %18, %21 : vector<32x64xf32>
    %23 = math.tanh %22 : vector<32x64xf32>
    %c2_18 = arith.constant 2 : index
    %c0_19 = arith.constant 0 : index
    %c0_20 = arith.constant 0 : index
    %24 = vector.load %arg3[%c2_18, %c0_19, %c0_20] : memref<3x32x32xf32, #tpu.memory_space<vmem>>, vector<1x32x32xf32>
    %25 = vector.shape_cast %24 : vector<1x32x32xf32> to vector<32x32xf32>
    %cst_21 = arith.constant dense<0.000000e+00> : vector<32x64xf32>
    %26 = tpu.matmul %25, %23, %cst_21 {dimension_numbers = #tpu.dot_dimension_numbers<[1], [0], [0], [1], [0, 0, 1, 1], [], []>} : vector<32x32xf32>, vector<32x64xf32>, vector<32x64xf32> -> vector<32x64xf32>
    %c3 = arith.constant 3 : index
    %c0_22 = arith.constant 0 : index
    %c0_23 = arith.constant 0 : index
    %27 = vector.load %arg5[%c3, %c0_22, %c0_23] : memref<4x32x1xf32, #tpu.memory_space<vmem>>, vector<1x32x1xf32>
    %28 = vector.shape_cast %27 : vector<1x32x1xf32> to vector<32x1xf32>
    %29 = vector.broadcast %28 : vector<32x1xf32> to vector<32x64xf32>
    %30 = arith.addf %26, %29 : vector<32x64xf32>
    %31 = math.tanh %30 : vector<32x64xf32>
    %c0_24 = arith.constant 0 : index
    %c0_25 = arith.constant 0 : index
    %32 = vector.load %arg4[%c0_24, %c0_25] : memref<2x32xf32, #tpu.memory_space<vmem>>, vector<2x32xf32>
    %cst_26 = arith.constant dense<0.000000e+00> : vector<64x2xf32>
    %33 = tpu.matmul %31, %32, %cst_26 {dimension_numbers = #tpu.dot_dimension_numbers<[0], [1], [1], [0], [0, 1, 1, 0], [], []>} : vector<32x64xf32>, vector<2x32xf32>, vector<64x2xf32> -> vector<64x2xf32>
    %c0_27 = arith.constant 0 : index
    %c0_28 = arith.constant 0 : index
    %34 = vector.load %arg6[%c0_27, %c0_28] : memref<1x2xf32, #tpu.memory_space<vmem>>, vector<1x2xf32>
    %35 = vector.broadcast %34 : vector<1x2xf32> to vector<64x2xf32>
    %36 = arith.addf %33, %35 : vector<64x2xf32>
    %c0_29 = arith.constant 0 : index
    %c0_30 = arith.constant 0 : index
    %37 = vector.load %arg7[%c0_29, %c0_30] : memref<64x2xf32, #tpu.memory_space<vmem>>, vector<64x2xf32>
    tpu.vector_store %arg7[%c0_29, %c0_30], %36 {strides = array<i32>} : memref<64x2xf32, #tpu.memory_space<vmem>>, vector<64x2xf32>,
    return
  }
  func.func @transform_0(%arg0: i32) -> (i32, i32) {
    %c0_i32 = arith.constant 0 : i32
    %c0_i32_0 = arith.constant 0 : i32
    return %arg0, %c0_i32 : i32, i32
  }
  func.func @transform_1(%arg0: i32) -> (i32, i32) {
    %c0_i32 = arith.constant 0 : i32
    %c0_i32_0 = arith.constant 0 : i32
    %c0_i32_1 = arith.constant 0 : i32
    return %c0_i32, %c0_i32_0 : i32, i32
  }
  func.func @transform_2(%arg0: i32) -> (i32, i32, i32) {
    %c0_i32 = arith.constant 0 : i32
    %c0_i32_0 = arith.constant 0 : i32
    %c0_i32_1 = arith.constant 0 : i32
    %c0_i32_2 = arith.constant 0 : i32
    return %c0_i32, %c0_i32_0, %c0_i32_1 : i32, i32, i32
  }
  func.func @transform_3(%arg0: i32) -> (i32, i32) {
    %c0_i32 = arith.constant 0 : i32
    %c0_i32_0 = arith.constant 0 : i32
    %c0_i32_1 = arith.constant 0 : i32
    return %c0_i32, %c0_i32_0 : i32, i32
  }
  func.func @transform_4(%arg0: i32) -> (i32, i32, i32) {
    %c0_i32 = arith.constant 0 : i32
    %c0_i32_0 = arith.constant 0 : i32
    %c0_i32_1 = arith.constant 0 : i32
    %c0_i32_2 = arith.constant 0 : i32
    return %c0_i32, %c0_i32_0, %c0_i32_1 : i32, i32, i32
  }
  func.func @transform_5(%arg0: i32) -> (i32, i32) {
    %c0_i32 = arith.constant 0 : i32
    %c0_i32_0 = arith.constant 0 : i32
    %c0_i32_1 = arith.constant 0 : i32
    return %c0_i32, %c0_i32_0 : i32, i32
  }
  func.func @transform_6(%arg0: i32) -> (i32, i32) {
    %c0_i32 = arith.constant 0 : i32
    %c0_i32_0 = arith.constant 0 : i32
    return %arg0, %c0_i32 : i32, i32
  }
}

</mosaic_0001>

<llo_original>
// kernel: tpu_custom_call.1
$region0: #{tpu_custom_call.1}
  #allocation0 [shape = 'u32[]', space=smem, size = 0x4, offset = 0x4, fixed_abs, tag = 'smem constant byte address 0x4 - core index']
  #allocation1 [shape = 'u32[144,128]{1,0:T(1,128)}', space=vmem, size = 0x12000, scoped, tag = 'internal scratch']
  %s0 = inlined_call_operand.vmem [shape: f32[64,2], index: 0, kind: input, shape index: {}]
  %s1 = inlined_call_operand.vmem [shape: f32[32,2], index: 1, kind: input, shape index: {}]
  %s2 = inlined_call_operand.vmem [shape: f32[3,32,32], index: 2, kind: input, shape index: {}]
  %s3 = inlined_call_operand.vmem [shape: f32[2,32], index: 3, kind: input, shape index: {}]
  %s4 = inlined_call_operand.vmem [shape: f32[4,32,1], index: 4, kind: input, shape index: {}]
  %s5 = inlined_call_operand.vmem [shape: f32[1,2], index: 5, kind: input, shape index: {}]
  %s6 = inlined_call_operand.vmem [shape: f32[64,2], index: 6, kind: output, shape index: {}]
  %s7 = sld [smem:[#allocation0]]
  $region34: #{tpu_custom_call.1} parent=0
    _
  %s9 = ssub.s32 1, %s7
  %s10 = scalar_select 0, %s9, %s7
  // Predicated region
  $region2: #{tpu_custom_call.1} parent=0 // pred_check
    _
  $region3: #{tpu_custom_call.1} parent=0 // pred_check_branch
    %12 = sbr.rel (0) target = $region5
  $region4: #{tpu_custom_call.1} parent=0 // pred_region
    _
  $region5: #{tpu_custom_call.1} parent=0 // pred_fallthru
    _
  // Predicated region
  $region6: #{tpu_custom_call.1} parent=0 // pred_check
    _
  $region7: #{tpu_custom_call.1} parent=0 // pred_check_branch
    %14 = sbr.rel (0) target = $region9
  $region8: #{tpu_custom_call.1} parent=0 // pred_region
    _
  $region9: #{tpu_custom_call.1} parent=0 // pred_fallthru
    _
  // Predicated region
  $region10: #{tpu_custom_call.1} parent=0 // pred_check
    _
  $region11: #{tpu_custom_call.1} parent=0 // pred_check_branch
    %16 = sbr.rel (0) target = $region13
  $region12: #{tpu_custom_call.1} parent=0 // pred_region
    _
  $region13: #{tpu_custom_call.1} parent=0 // pred_fallthru
    _
  // Predicated region
  $region14: #{tpu_custom_call.1} parent=0 // pred_check
    _
  $region15: #{tpu_custom_call.1} parent=0 // pred_check_branch
    %18 = sbr.rel (0) target = $region17
  $region16: #{tpu_custom_call.1} parent=0 // pred_region
    _
  $region17: #{tpu_custom_call.1} parent=0 // pred_fallthru
    _
  // Predicated region
  $region18: #{tpu_custom_call.1} parent=0 // pred_check
    _
  $region19: #{tpu_custom_call.1} parent=0 // pred_check_branch
    %20 = sbr.rel (0) target = $region21
  $region20: #{tpu_custom_call.1} parent=0 // pred_region
    _
  $region21: #{tpu_custom_call.1} parent=0 // pred_fallthru
    _
  // Predicated region
  $region22: #{tpu_custom_call.1} parent=0 // pred_check
    _
  $region23: #{tpu_custom_call.1} parent=0 // pred_check_branch
    %22 = sbr.rel (0) target = $region25
  $region24: #{tpu_custom_call.1} parent=0 // pred_region
    _
  $region25: #{tpu_custom_call.1} parent=0 // pred_fallthru
    _
  %v23 = vld [vmem:[%s0] sm:$0xff]
  %v24 = vld [vmem:[%s0 + $0x8] sm:$0xff]
  %v25 = vld [vmem:[%s0 + $0x10] sm:$0xff]
  %v26 = vld [vmem:[%s0 + $0x18] sm:$0xff]
  %v27 = vld [vmem:[%s0 + $0x20] sm:$0xff]
  %v28 = vld [vmem:[%s0 + $0x28] sm:$0xff]
  %v29 = vld [vmem:[%s0 + $0x30] sm:$0xff]
  %v30 = vld [vmem:[%s0 + $0x38] sm:$0xff]
  %v31 = vld [vmem:[%s1] sm:$0xff]
  %v32 = vld [vmem:[%s1 + $0x8] sm:$0xff]
  %v33 = vld [vmem:[%s1 + $0x10] sm:$0xff]
  %v34 = vld [vmem:[%s1 + $0x18] sm:$0xff]
  %v35 = vld [vmem:[%s4] sm:$0xff]
  %v36 = vld [vmem:[%s4 + $0x8] sm:$0xff]
  %v37 = vld [vmem:[%s4 + $0x10] sm:$0xff]
  %v38 = vld [vmem:[%s4 + $0x18] sm:$0xff]
  %40 = vset.pattern.permute.xlu0 0
  %41 = vperm.xlu0 %40, %v35
  %v42 = vpop.permute.xlu0 %41
  %45 = vset.pattern.permute.xlu0 0
  %46 = vperm.xlu0 %45, %v36
  %v47 = vpop.permute.xlu0 %46
  %50 = vset.pattern.permute.xlu0 0
  %51 = vperm.xlu0 %50, %v37
  %v52 = vpop.permute.xlu0 %51
  %55 = vset.pattern.permute.xlu0 0
  %56 = vperm.xlu0 %55, %v38
  %v57 = vpop.permute.xlu0 %56
  %vm59 = vcmask 15360
  %v61 = vsel %vm59, %v31, 0
  %v64 = vsel %vm59, %v32, 0
  %v67 = vsel %vm59, %v33, 0
  %v70 = vsel %vm59, %v34, 0
  %v73 = vsel %vm59, %v23, 0
  %v76 = vsel %vm59, %v24, 0
  %v79 = vsel %vm59, %v25, 0
  %v82 = vsel %vm59, %v26, 0
  %v85 = vsel %vm59, %v27, 0
  %v88 = vsel %vm59, %v28, 0
  %v91 = vsel %vm59, %v29, 0
  %v94 = vsel %vm59, %v30, 0
  %96 = vmatprep.subr.mxu0 0.0
  %97 = vmatpush1.xpose.msra.mxu0 %v73
  %98 = vmatprep.subr.mxu0 0.0
  %99 = vmatpush1.xpose.msra.mxu0 %v76
  %100 = vmatprep.subr.mxu0 0.0
  %101 = vmatpush1.xpose.msra.mxu0 %v79
  %102 = vmatprep.subr.mxu0 0.0
  %103 = vmatpush1.xpose.msra.mxu0 %v82
  %104 = vmatprep.subr.mxu0 0.0
  %105 = vmatpush1.xpose.msra.mxu0 %v85
  %106 = vmatprep.subr.mxu0 0.0
  %107 = vmatpush1.xpose.msra.mxu0 %v88
  %108 = vmatprep.subr.mxu0 0.0
  %109 = vmatpush1.xpose.msra.mxu0 %v91
  %110 = vmatprep.subr.mxu0 0.0
  %111 = vmatpush1.xpose.msra.mxu0 %v94
  %112 = vmatprep.subr.mxu0 0.0
  %113 = vmatpush1.xpose.msra.mxu0 0.0
  %114 = vmatprep.subr.mxu0 0.0
  %115 = vmatpush1.xpose.msra.mxu0 0.0
  %116 = vmatprep.subr.mxu0 0.0
  %117 = vmatpush1.xpose.msra.mxu0 0.0
  %118 = vmatprep.subr.mxu0 0.0
  %119 = vmatpush1.xpose.msra.mxu0 0.0
  %120 = vmatprep.subr.mxu0 0.0
  %121 = vmatpush1.xpose.msra.mxu0 0.0
  %122 = vmatprep.subr.mxu0 0.0
  %123 = vmatpush1.xpose.msra.mxu0 0.0
  %124 = vmatprep.subr.mxu0 0.0
  %125 = vmatpush1.xpose.msra.mxu0 0.0
  %126 = vmatprep.subr.mxu0 0.0
  %127 = vmatpush1.xpose.msra.mxu0 0.0
  %128 = vmatprep.subr.mxu0 0.0
  %129 = vmatpush1.xpose.msra.mxu0 0.0
  %130 = vmatprep.subr.mxu0 0.0
  %131 = vmatpush1.xpose.msra.mxu0 0.0
  %132 = vmatprep.subr.mxu0 0.0
  %133 = vmatpush1.xpose.msra.mxu0 0.0
  %134 = vmatprep.subr.mxu0 0.0
  %135 = vmatpush1.xpose.msra.mxu0 0.0
  %136 = vmatprep.subr.mxu0 0.0
  %137 = vmatpush1.xpose.msra.mxu0 0.0
  %138 = vmatprep.subr.mxu0 0.0
  %139 = vmatpush1.xpose.msra.mxu0 0.0
  %140 = vmatprep.subr.mxu0 0.0
  %141 = vmatpush1.xpose.msra.mxu0 0.0
  %142 = vmatprep.subr.mxu0 0.0
  %143 = vmatpush1.xpose.msra.mxu0 0.0
  %144 = vmatprep.subr.mxu0 0.0
  %145 = vmatpush1.xpose.msra.mxu0 0.0
  %146 = vmatprep.subr.mxu0 0.0
  %147 = vmatpush1.xpose.msra.mxu0 0.0
  %148 = vmatprep.subr.mxu0 0.0
  %149 = vmatpush1.xpose.msra.mxu0 0.0
  %150 = vmatprep.subr.mxu0 0.0
  %151 = vmatpush1.xpose.msra.mxu0 0.0
  %152 = vmatprep.subr.mxu0 0.0
  %153 = vmatpush1.xpose.msra.mxu0 0.0
  %154 = vmatprep.subr.mxu0 0.0
  %155 = vmatpush1.xpose.msra.mxu0 0.0
  %156 = vmatprep.subr.mxu0 0.0
  %157 = vmatpush1.xpose.msra.mxu0 0.0
  %158 = vmatprep.subr.mxu0 0.0
  %159 = vmatpush1.xpose.msra.mxu0 0.0
  %160 = vmatprep.mubr.f32.mxu0 0.0
  %161 = vmatmul.mubr.f32.gmra.mrb[0].mxu0 %v61
  %v162 = vpop.f32.mrb[0].mxu0
  %v163 = vadd.f32 %v42, %v162
  %v164 = vpop.f32.mrb[0].mxu0
  %165 = vmatprep.mubr.f32.mxu0 0.0
  %166 = vmatmul.mubr.f32.gmra.mrb[0].mxu0 %v64
  %v167 = vpop.f32.mrb[0].mxu0
  %v168 = vadd.f32 %v47, %v167
  %v169 = vpop.f32.mrb[0].mxu0
  %170 = vmatprep.mubr.f32.mxu0 0.0
  %171 = vmatmul.mubr.f32.gmra.mrb[0].mxu0 %v67
  %v172 = vpop.f32.mrb[0].mxu0
  %v173 = vadd.f32 %v52, %v172
  %v174 = vpop.f32.mrb[0].mxu0
  %175 = vmatprep.mubr.f32.mxu0 0.0
  %176 = vmatmul.mubr.f32.gmra.mrb[0].mxu0 %v70
  %v177 = vpop.f32.mrb[0].mxu0
  %v178 = vadd.f32 %v57, %v177
  %v179 = vpop.f32.mrb[0].mxu0
  %180 = vdwg.mxu0
  %v181 = vtanh.pop %v163
  %v182 = vtanh.pop %v168
  %v183 = vtanh.pop %v173
  %v184 = vtanh.pop %v178
  %v185 = vld [vmem:[%s2] sm:$0xff]
  %v186 = vld [vmem:[%s2 + $0x8] sm:$0xff]
  %v187 = vld [vmem:[%s2 + $0x10] sm:$0xff]
  %v188 = vld [vmem:[%s2 + $0x18] sm:$0xff]
  %s189 = scalar_lea.vmem %s4, 32
  %v190 = vld [vmem:[%s189] sm:$0xff]
  %v191 = vld [vmem:[%s189 + $0x8] sm:$0xff]
  %v192 = vld [vmem:[%s189 + $0x10] sm:$0xff]
  %v193 = vld [vmem:[%s189 + $0x18] sm:$0xff]
  %195 = vset.pattern.permute.xlu0 0
  %196 = vperm.xlu0 %195, %v190
  %v197 = vpop.permute.xlu0 %196
  %200 = vset.pattern.permute.xlu0 0
  %201 = vperm.xlu0 %200, %v191
  %v202 = vpop.permute.xlu0 %201
  %205 = vset.pattern.permute.xlu0 0
  %206 = vperm.xlu0 %205, %v192
  %v207 = vpop.permute.xlu0 %206
  %210 = vset.pattern.permute.xlu0 0
  %211 = vperm.xlu0 %210, %v193
  %v212 = vpop.permute.xlu0 %211
  %vm214 = vcmask 261120
  %v216 = vsel %vm214, %v185, 0
  %v219 = vsel %vm214, %v186, 0
  %v222 = vsel %vm214, %v187, 0
  %v225 = vsel %vm214, %v188, 0
  %227 = vmatprep.subr.mxu0 0.0
  %228 = vmatpush1.msra.mxu0 %v181
  %229 = vmatprep.subr.mxu0 0.0
  %230 = vmatpush1.msra.mxu0 %v182
  %231 = vmatprep.subr.mxu0 0.0
  %232 = vmatpush1.msra.mxu0 %v183
  %233 = vmatprep.subr.mxu0 0.0
  %234 = vmatpush1.msra.mxu0 %v184
  %235 = vmatprep.subr.mxu0 0.0
  %236 = vmatpush1.msra.mxu0 0.0
  %237 = vmatprep.subr.mxu0 0.0
  %238 = vmatpush1.msra.mxu0 0.0
  %239 = vmatprep.subr.mxu0 0.0
  %240 = vmatpush1.msra.mxu0 0.0
  %241 = vmatprep.subr.mxu0 0.0
  %242 = vmatpush1.msra.mxu0 0.0
  %243 = vmatprep.subr.mxu0 0.0
  %244 = vmatpush1.msra.mxu0 0.0
  %245 = vmatprep.subr.mxu0 0.0
  %246 = vmatpush1.msra.mxu0 0.0
  %247 = vmatprep.subr.mxu0 0.0
  %248 = vmatpush1.msra.mxu0 0.0
  %249 = vmatprep.subr.mxu0 0.0
  %250 = vmatpush1.msra.mxu0 0.0
  %251 = vmatprep.subr.mxu0 0.0
  %252 = vmatpush1.msra.mxu0 0.0
  %253 = vmatprep.subr.mxu0 0.0
  %254 = vmatpush1.msra.mxu0 0.0
  %255 = vmatprep.subr.mxu0 0.0
  %256 = vmatpush1.msra.mxu0 0.0
  %257 = vmatprep.subr.mxu0 0.0
  %258 = vmatpush1.msra.mxu0 0.0
  %259 = vmatprep.subr.mxu0 0.0
  %260 = vmatpush1.msra.mxu0 0.0
  %261 = vmatprep.subr.mxu0 0.0
  %262 = vmatpush1.msra.mxu0 0.0
  %263 = vmatprep.subr.mxu0 0.0
  %264 = vmatpush1.msra.mxu0 0.0
  %265 = vmatprep.subr.mxu0 0.0
  %266 = vmatpush1.msra.mxu0 0.0
  %267 = vmatprep.subr.mxu0 0.0
  %268 = vmatpush1.msra.mxu0 0.0
  %269 = vmatprep.subr.mxu0 0.0
  %270 = vmatpush1.msra.mxu0 0.0
  %271 = vmatprep.subr.mxu0 0.0
  %272 = vmatpush1.msra.mxu0 0.0
  %273 = vmatprep.subr.mxu0 0.0
  %274 = vmatpush1.msra.mxu0 0.0
  %275 = vmatprep.subr.mxu0 0.0
  %276 = vmatpush1.msra.mxu0 0.0
  %277 = vmatprep.subr.mxu0 0.0
  %278 = vmatpush1.msra.mxu0 0.0
  %279 = vmatprep.subr.mxu0 0.0
  %280 = vmatpush1.msra.mxu0 0.0
  %281 = vmatprep.subr.mxu0 0.0
  %282 = vmatpush1.msra.mxu0 0.0
  %283 = vmatprep.subr.mxu0 0.0
  %284 = vmatpush1.msra.mxu0 0.0
  %285 = vmatprep.subr.mxu0 0.0
  %286 = vmatpush1.msra.mxu0 0.0
  %287 = vmatprep.subr.mxu0 0.0
  %288 = vmatpush1.msra.mxu0 0.0
  %289 = vmatprep.subr.mxu0 0.0
  %290 = vmatpush1.msra.mxu0 0.0
  %291 = vmatprep.mubr.f32.mxu0 0.0
  %292 = vmatmul.mubr.f32.gmra.mrb[0].mxu0 %v216
  %v293 = vpop.f32.mrb[0].mxu0
  %v294 = vadd.f32 %v197, %v293
  %v295 = vpop.f32.mrb[0].mxu0
  %296 = vmatprep.mubr.f32.mxu0 0.0
  %297 = vmatmul.mubr.f32.gmra.mrb[0].mxu0 %v219
  %v298 = vpop.f32.mrb[0].mxu0
  %v299 = vadd.f32 %v202, %v298
  %v300 = vpop.f32.mrb[0].mxu0
  %301 = vmatprep.mubr.f32.mxu0 0.0
  %302 = vmatmul.mubr.f32.gmra.mrb[0].mxu0 %v222
  %v303 = vpop.f32.mrb[0].mxu0
  %v304 = vadd.f32 %v207, %v303
  %v305 = vpop.f32.mrb[0].mxu0
  %306 = vmatprep.mubr.f32.mxu0 0.0
  %307 = vmatmul.mubr.f32.gmra.mrb[0].mxu0 %v225
  %v308 = vpop.f32.mrb[0].mxu0
  %v309 = vadd.f32 %v212, %v308
  %v310 = vpop.f32.mrb[0].mxu0
  %311 = vdwg.mxu0
  %v312 = vtanh.pop %v294
  %v313 = vtanh.pop %v299
  %v314 = vtanh.pop %v304
  %v315 = vtanh.pop %v309
  %s316 = scalar_lea.vmem %s2, 32
  %v317 = vld [vmem:[%s316] sm:$0xff]
  %v318 = vld [vmem:[%s316 + $0x8] sm:$0xff]
  %v319 = vld [vmem:[%s316 + $0x10] sm:$0xff]
  %v320 = vld [vmem:[%s316 + $0x18] sm:$0xff]
  %s321 = scalar_lea.vmem %s4, 64
  %v322 = vld [vmem:[%s321] sm:$0xff]
  %v323 = vld [vmem:[%s321 + $0x8] sm:$0xff]
  %v324 = vld [vmem:[%s321 + $0x10] sm:$0xff]
  %v325 = vld [vmem:[%s321 + $0x18] sm:$0xff]
  %327 = vset.pattern.permute.xlu0 0
  %328 = vperm.xlu0 %327, %v322
  %v329 = vpop.permute.xlu0 %328
  %332 = vset.pattern.permute.xlu0 0
  %333 = vperm.xlu0 %332, %v323
  %v334 = vpop.permute.xlu0 %333
  %337 = vset.pattern.permute.xlu0 0
  %338 = vperm.xlu0 %337, %v324
  %v339 = vpop.permute.xlu0 %338
  %342 = vset.pattern.permute.xlu0 0
  %343 = vperm.xlu0 %342, %v325
  %v344 = vpop.permute.xlu0 %343
  %v347 = vsel %vm214, %v317, 0
  %v350 = vsel %vm214, %v318, 0
  %v353 = vsel %vm214, %v319, 0
  %v356 = vsel %vm214, %v320, 0
  %358 = vmatprep.subr.mxu0 0.0
  %359 = vmatpush1.msra.mxu0 %v312
  %360 = vmatprep.subr.mxu0 0.0
  %361 = vmatpush1.msra.mxu0 %v313
  %362 = vmatprep.subr.mxu0 0.0
  %363 = vmatpush1.msra.mxu0 %v314
  %364 = vmatprep.subr.mxu0 0.0
  %365 = vmatpush1.msra.mxu0 %v315
  %366 = vmatprep.subr.mxu0 0.0
  %367 = vmatpush1.msra.mxu0 0.0
  %368 = vmatprep.subr.mxu0 0.0
  %369 = vmatpush1.msra.mxu0 0.0
  %370 = vmatprep.subr.mxu0 0.0
  %371 = vmatpush1.msra.mxu0 0.0
  %372 = vmatprep.subr.mxu0 0.0
  %373 = vmatpush1.msra.mxu0 0.0
  %374 = vmatprep.subr.mxu0 0.0
  %375 = vmatpush1.msra.mxu0 0.0
  %376 = vmatprep.subr.mxu0 0.0
  %377 = vmatpush1.msra.mxu0 0.0
  %378 = vmatprep.subr.mxu0 0.0
  %379 = vmatpush1.msra.mxu0 0.0
  %380 = vmatprep.subr.mxu0 0.0
  %381 = vmatpush1.msra.mxu0 0.0
  %382 = vmatprep.subr.mxu0 0.0
  %383 = vmatpush1.msra.mxu0 0.0
  %384 = vmatprep.subr.mxu0 0.0
  %385 = vmatpush1.msra.mxu0 0.0
  %386 = vmatprep.subr.mxu0 0.0
  %387 = vmatpush1.msra.mxu0 0.0
  %388 = vmatprep.subr.mxu0 0.0
  %389 = vmatpush1.msra.mxu0 0.0
  %390 = vmatprep.subr.mxu0 0.0
  %391 = vmatpush1.msra.mxu0 0.0
  %392 = vmatprep.subr.mxu0 0.0
  %393 = vmatpush1.msra.mxu0 0.0
  %394 = vmatprep.subr.mxu0 0.0
  %395 = vmatpush1.msra.mxu0 0.0
  %396 = vmatprep.subr.mxu0 0.0
  %397 = vmatpush1.msra.mxu0 0.0
  %398 = vmatprep.subr.mxu0 0.0
  %399 = vmatpush1.msra.mxu0 0.0
  %400 = vmatprep.subr.mxu0 0.0
  %401 = vmatpush1.msra.mxu0 0.0
  %402 = vmatprep.subr.mxu0 0.0
  %403 = vmatpush1.msra.mxu0 0.0
  %404 = vmatprep.subr.mxu0 0.0
  %405 = vmatpush1.msra.mxu0 0.0
  %406 = vmatprep.subr.mxu0 0.0
  %407 = vmatpush1.msra.mxu0 0.0
  %408 = vmatprep.subr.mxu0 0.0
  %409 = vmatpush1.msra.mxu0 0.0
  %410 = vmatprep.subr.mxu0 0.0
  %411 = vmatpush1.msra.mxu0 0.0
  %412 = vmatprep.subr.mxu0 0.0
  %413 = vmatpush1.msra.mxu0 0.0
  %414 = vmatprep.subr.mxu0 0.0
  %415 = vmatpush1.msra.mxu0 0.0
  %416 = vmatprep.subr.mxu0 0.0
  %417 = vmatpush1.msra.mxu0 0.0
  %418 = vmatprep.subr.mxu0 0.0
  %419 = vmatpush1.msra.mxu0 0.0
  %420 = vmatprep.subr.mxu0 0.0
  %421 = vmatpush1.msra.mxu0 0.0
  %422 = vmatprep.mubr.f32.mxu0 0.0
  %423 = vmatmul.mubr.f32.gmra.mrb[0].mxu0 %v347
  %v424 = vpop.f32.mrb[0].mxu0
  %v425 = vadd.f32 %v329, %v424
  %v426 = vpop.f32.mrb[0].mxu0
  %427 = vmatprep.mubr.f32.mxu0 0.0
  %428 = vmatmul.mubr.f32.gmra.mrb[0].mxu0 %v350
  %v429 = vpop.f32.mrb[0].mxu0
  %v430 = vadd.f32 %v334, %v429
  %v431 = vpop.f32.mrb[0].mxu0
  %432 = vmatprep.mubr.f32.mxu0 0.0
  %433 = vmatmul.mubr.f32.gmra.mrb[0].mxu0 %v353
  %v434 = vpop.f32.mrb[0].mxu0
  %v435 = vadd.f32 %v339, %v434
  %v436 = vpop.f32.mrb[0].mxu0
  %437 = vmatprep.mubr.f32.mxu0 0.0
  %438 = vmatmul.mubr.f32.gmra.mrb[0].mxu0 %v356
  %v439 = vpop.f32.mrb[0].mxu0
  %v440 = vadd.f32 %v344, %v439
  %v441 = vpop.f32.mrb[0].mxu0
  %442 = vdwg.mxu0
  %v443 = vtanh.pop %v425
  %v444 = vtanh.pop %v430
  %v445 = vtanh.pop %v435
  %v446 = vtanh.pop %v440
  %s447 = scalar_lea.vmem %s2, 64
  %v448 = vld [vmem:[%s447] sm:$0xff]
  %v449 = vld [vmem:[%s447 + $0x8] sm:$0xff]
  %v450 = vld [vmem:[%s447 + $0x10] sm:$0xff]
  %v451 = vld [vmem:[%s447 + $0x18] sm:$0xff]
  %s452 = scalar_lea.vmem %s4, 96
  %v453 = vld [vmem:[%s452] sm:$0xff]
  %v454 = vld [vmem:[%s452 + $0x8] sm:$0xff]
  %v455 = vld [vmem:[%s452 + $0x10] sm:$0xff]
  %v456 = vld [vmem:[%s452 + $0x18] sm:$0xff]
  %458 = vset.pattern.permute.xlu0 0
  %459 = vperm.xlu0 %458, %v453
  %v460 = vpop.permute.xlu0 %459
  %463 = vset.pattern.permute.xlu0 0
  %464 = vperm.xlu0 %463, %v454
  %v465 = vpop.permute.xlu0 %464
  %468 = vset.pattern.permute.xlu0 0
  %469 = vperm.xlu0 %468, %v455
  %v470 = vpop.permute.xlu0 %469
  %473 = vset.pattern.permute.xlu0 0
  %474 = vperm.xlu0 %473, %v456
  %v475 = vpop.permute.xlu0 %474
  %v478 = vsel %vm214, %v448, 0
  %v481 = vsel %vm214, %v449, 0
  %v484 = vsel %vm214, %v450, 0
  %v487 = vsel %vm214, %v451, 0
  %489 = vmatprep.subr.mxu0 0.0
  %490 = vmatpush1.msra.mxu0 %v443
  %491 = vmatprep.subr.mxu0 0.0
  %492 = vmatpush1.msra.mxu0 %v444
  %493 = vmatprep.subr.mxu0 0.0
  %494 = vmatpush1.msra.mxu0 %v445
  %495 = vmatprep.subr.mxu0 0.0
  %496 = vmatpush1.msra.mxu0 %v446
  %497 = vmatprep.subr.mxu0 0.0
  %498 = vmatpush1.msra.mxu0 0.0
  %499 = vmatprep.subr.mxu0 0.0
  %500 = vmatpush1.msra.mxu0 0.0
  %501 = vmatprep.subr.mxu0 0.0
  %502 = vmatpush1.msra.mxu0 0.0
  %503 = vmatprep.subr.mxu0 0.0
  %504 = vmatpush1.msra.mxu0 0.0
  %505 = vmatprep.subr.mxu0 0.0
  %506 = vmatpush1.msra.mxu0 0.0
  %507 = vmatprep.subr.mxu0 0.0
  %508 = vmatpush1.msra.mxu0 0.0
  %509 = vmatprep.subr.mxu0 0.0
  %510 = vmatpush1.msra.mxu0 0.0
  %511 = vmatprep.subr.mxu0 0.0
  %512 = vmatpush1.msra.mxu0 0.0
  %513 = vmatprep.subr.mxu0 0.0
  %514 = vmatpush1.msra.mxu0 0.0
  %515 = vmatprep.subr.mxu0 0.0
  %516 = vmatpush1.msra.mxu0 0.0
  %517 = vmatprep.subr.mxu0 0.0
  %518 = vmatpush1.msra.mxu0 0.0
  %519 = vmatprep.subr.mxu0 0.0
  %520 = vmatpush1.msra.mxu0 0.0
  %521 = vmatprep.subr.mxu0 0.0
  %522 = vmatpush1.msra.mxu0 0.0
  %523 = vmatprep.subr.mxu0 0.0
  %524 = vmatpush1.msra.mxu0 0.0
  %525 = vmatprep.subr.mxu0 0.0
  %526 = vmatpush1.msra.mxu0 0.0
  %527 = vmatprep.subr.mxu0 0.0
  %528 = vmatpush1.msra.mxu0 0.0
  %529 = vmatprep.subr.mxu0 0.0
  %530 = vmatpush1.msra.mxu0 0.0
  %531 = vmatprep.subr.mxu0 0.0
  %532 = vmatpush1.msra.mxu0 0.0
  %533 = vmatprep.subr.mxu0 0.0
  %534 = vmatpush1.msra.mxu0 0.0
  %535 = vmatprep.subr.mxu0 0.0
  %536 = vmatpush1.msra.mxu0 0.0
  %537 = vmatprep.subr.mxu0 0.0
  %538 = vmatpush1.msra.mxu0 0.0
  %539 = vmatprep.subr.mxu0 0.0
  %540 = vmatpush1.msra.mxu0 0.0
  %541 = vmatprep.subr.mxu0 0.0
  %542 = vmatpush1.msra.mxu0 0.0
  %543 = vmatprep.subr.mxu0 0.0
  %544 = vmatpush1.msra.mxu0 0.0
  %545 = vmatprep.subr.mxu0 0.0
  %546 = vmatpush1.msra.mxu0 0.0
  %547 = vmatprep.subr.mxu0 0.0
  %548 = vmatpush1.msra.mxu0 0.0
  %549 = vmatprep.subr.mxu0 0.0
  %550 = vmatpush1.msra.mxu0 0.0
  %551 = vmatprep.subr.mxu0 0.0
  %552 = vmatpush1.msra.mxu0 0.0
  %553 = vmatprep.mubr.f32.mxu0 0.0
  %554 = vmatmul.mubr.f32.gmra.mrb[0].mxu0 %v478
  %v555 = vpop.f32.mrb[0].mxu0
  %v556 = vadd.f32 %v460, %v555
  %v557 = vpop.f32.mrb[0].mxu0
  %558 = vmatprep.mubr.f32.mxu0 0.0
  %559 = vmatmul.mubr.f32.gmra.mrb[0].mxu0 %v481
  %v560 = vpop.f32.mrb[0].mxu0
  %v561 = vadd.f32 %v465, %v560
  %v562 = vpop.f32.mrb[0].mxu0
  %563 = vmatprep.mubr.f32.mxu0 0.0
  %564 = vmatmul.mubr.f32.gmra.mrb[0].mxu0 %v484
  %v565 = vpop.f32.mrb[0].mxu0
  %v566 = vadd.f32 %v470, %v565
  %v567 = vpop.f32.mrb[0].mxu0
  %568 = vmatprep.mubr.f32.mxu0 0.0
  %569 = vmatmul.mubr.f32.gmra.mrb[0].mxu0 %v487
  %v570 = vpop.f32.mrb[0].mxu0
  %v571 = vadd.f32 %v475, %v570
  %v572 = vpop.f32.mrb[0].mxu0
  %573 = vdwg.mxu0
  %v574 = vtanh.pop %v556
  %v575 = vtanh.pop %v561
  %v576 = vtanh.pop %v566
  %v577 = vtanh.pop %v571
  %v578 = vld [vmem:[%s3] sm:$0x3]
  %v579 = vld [vmem:[%s5] sm:$0x1]
  %v581 = vlaneseq
  %v582 = vshrl.u32 %v581, 7
  %v583 = vsub.s32 0, %v582
  %v584 = vrot.slane %v579, %v583
  %586 = vxpose.xlu0.b32.start [1/16] %v574, 128
  %587 = vxpose.xlu0.b32.cont [2/16] %v575, 128
  %588 = vxpose.xlu0.b32.cont [3/16] %v576, 128
  %589 = vxpose.xlu0.b32.cont [4/16] %v577, 128
  %590 = vxpose.xlu0.b32.cont [5/16] 0.0, 128
  %591 = vxpose.xlu0.b32.cont [6/16] 0.0, 128
  %592 = vxpose.xlu0.b32.cont [7/16] 0.0, 128
  %593 = vxpose.xlu0.b32.cont [8/16] 0.0, 128
  %594 = vxpose.xlu0.b32.cont [9/16] 0.0, 128
  %595 = vxpose.xlu0.b32.cont [10/16] 0.0, 128
  %596 = vxpose.xlu0.b32.cont [11/16] 0.0, 128
  %597 = vxpose.xlu0.b32.cont [12/16] 0.0, 128
  %598 = vxpose.xlu0.b32.cont [13/16] 0.0, 128
  %599 = vxpose.xlu0.b32.cont [14/16] 0.0, 128
  %600 = vxpose.xlu0.b32.cont [15/16] 0.0, 128
  %601 = vxpose.xlu0.b32.end [16/16] 0.0, 128
  %v602 = vpop.trf.xlu0
  %v603 = vpop.trf.xlu0
  %v604 = vpop.trf.xlu0
  %v605 = vpop.trf.xlu0
  %v606 = vpop.trf.xlu0
  %v607 = vpop.trf.xlu0
  %v608 = vpop.trf.xlu0
  %v609 = vpop.trf.xlu0
  %v610 = vpop.trf.xlu0
  %v611 = vpop.trf.xlu0
  %v612 = vpop.trf.xlu0
  %v613 = vpop.trf.xlu0
  %v614 = vpop.trf.xlu0
  %v615 = vpop.trf.xlu0
  %v616 = vpop.trf.xlu0
  %v617 = vpop.trf.xlu0
  %v619 = vsel %vm214, %v602, 0
  %v622 = vsel %vm214, %v603, 0
  %v625 = vsel %vm214, %v604, 0
  %v628 = vsel %vm214, %v605, 0
  %v631 = vsel %vm214, %v606, 0
  %v634 = vsel %vm214, %v607, 0
  %v637 = vsel %vm214, %v608, 0
  %v640 = vsel %vm214, %v609, 0
  %v643 = vsel %vm214, %v578, 0
  %645 = vmatprep.subr.mxu0 0.0
  %646 = vmatpush1.xpose.msra.mxu0 %v643
  %647 = vmatprep.subr.mxu0 0.0
  %648 = vmatpush1.xpose.msra.mxu0 0.0
  %649 = vmatprep.subr.mxu0 0.0
  %650 = vmatpush1.xpose.msra.mxu0 0.0
  %651 = vmatprep.subr.mxu0 0.0
  %652 = vmatpush1.xpose.msra.mxu0 0.0
  %653 = vmatprep.subr.mxu0 0.0
  %654 = vmatpush1.xpose.msra.mxu0 0.0
  %655 = vmatprep.subr.mxu0 0.0
  %656 = vmatpush1.xpose.msra.mxu0 0.0
  %657 = vmatprep.subr.mxu0 0.0
  %658 = vmatpush1.xpose.msra.mxu0 0.0
  %659 = vmatprep.subr.mxu0 0.0
  %660 = vmatpush1.xpose.msra.mxu0 0.0
  %661 = vmatprep.subr.mxu0 0.0
  %662 = vmatpush1.xpose.msra.mxu0 0.0
  %663 = vmatprep.subr.mxu0 0.0
  %664 = vmatpush1.xpose.msra.mxu0 0.0
  %665 = vmatprep.subr.mxu0 0.0
  %666 = vmatpush1.xpose.msra.mxu0 0.0
  %667 = vmatprep.subr.mxu0 0.0
  %668 = vmatpush1.xpose.msra.mxu0 0.0
  %669 = vmatprep.subr.mxu0 0.0
  %670 = vmatpush1.xpose.msra.mxu0 0.0
  %671 = vmatprep.subr.mxu0 0.0
  %672 = vmatpush1.xpose.msra.mxu0 0.0
  %673 = vmatprep.subr.mxu0 0.0
  %674 = vmatpush1.xpose.msra.mxu0 0.0
  %675 = vmatprep.subr.mxu0 0.0
  %676 = vmatpush1.xpose.msra.mxu0 0.0
  %677 = vmatprep.subr.mxu0 0.0
  %678 = vmatpush1.xpose.msra.mxu0 0.0
  %679 = vmatprep.subr.mxu0 0.0
  %680 = vmatpush1.xpose.msra.mxu0 0.0
  %681 = vmatprep.subr.mxu0 0.0
  %682 = vmatpush1.xpose.msra.mxu0 0.0
  %683 = vmatprep.subr.mxu0 0.0
  %684 = vmatpush1.xpose.msra.mxu0 0.0
  %685 = vmatprep.subr.mxu0 0.0
  %686 = vmatpush1.xpose.msra.mxu0 0.0
  %687 = vmatprep.subr.mxu0 0.0
  %688 = vmatpush1.xpose.msra.mxu0 0.0
  %689 = vmatprep.subr.mxu0 0.0
  %690 = vmatpush1.xpose.msra.mxu0 0.0
  %691 = vmatprep.subr.mxu0 0.0
  %692 = vmatpush1.xpose.msra.mxu0 0.0
  %693 = vmatprep.subr.mxu0 0.0
  %694 = vmatpush1.xpose.msra.mxu0 0.0
  %695 = vmatprep.subr.mxu0 0.0
  %696 = vmatpush1.xpose.msra.mxu0 0.0
  %697 = vmatprep.subr.mxu0 0.0
  %698 = vmatpush1.xpose.msra.mxu0 0.0
  %699 = vmatprep.subr.mxu0 0.0
  %700 = vmatpush1.xpose.msra.mxu0 0.0
  %701 = vmatprep.subr.mxu0 0.0
  %702 = vmatpush1.xpose.msra.mxu0 0.0
  %703 = vmatprep.subr.mxu0 0.0
  %704 = vmatpush1.xpose.msra.mxu0 0.0
  %705 = vmatprep.subr.mxu0 0.0
  %706 = vmatpush1.xpose.msra.mxu0 0.0
  %707 = vmatprep.subr.mxu0 0.0
  %708 = vmatpush1.xpose.msra.mxu0 0.0
  %709 = vmatprep.mubr.f32.mxu0 0.0
  %710 = vmatmul.mubr.f32.gmra.mrb[0].mxu0 %v619
  %v711 = vpop.f32.mrb[0].mxu0
  %v712 = vadd.f32 %v584, %v711
  %v713 = vpop.f32.mrb[0].mxu0
  %714 = vmatprep.mubr.f32.mxu0 0.0
  %715 = vmatmul.mubr.f32.gmra.mrb[0].mxu0 %v622
  %v716 = vpop.f32.mrb[0].mxu0
  %v717 = vadd.f32 %v584, %v716
  %v718 = vpop.f32.mrb[0].mxu0
  %719 = vmatprep.mubr.f32.mxu0 0.0
  %720 = vmatmul.mubr.f32.gmra.mrb[0].mxu0 %v625
  %v721 = vpop.f32.mrb[0].mxu0
  %v722 = vadd.f32 %v584, %v721
  %v723 = vpop.f32.mrb[0].mxu0
  %724 = vmatprep.mubr.f32.mxu0 0.0
  %725 = vmatmul.mubr.f32.gmra.mrb[0].mxu0 %v628
  %v726 = vpop.f32.mrb[0].mxu0
  %v727 = vadd.f32 %v584, %v726
  %v728 = vpop.f32.mrb[0].mxu0
  %729 = vmatprep.mubr.f32.mxu0 0.0
  %730 = vmatmul.mubr.f32.gmra.mrb[0].mxu0 %v631
  %v731 = vpop.f32.mrb[0].mxu0
  %v732 = vadd.f32 %v584, %v731
  %v733 = vpop.f32.mrb[0].mxu0
  %734 = vmatprep.mubr.f32.mxu0 0.0
  %735 = vmatmul.mubr.f32.gmra.mrb[0].mxu0 %v634
  %v736 = vpop.f32.mrb[0].mxu0
  %v737 = vadd.f32 %v584, %v736
  %v738 = vpop.f32.mrb[0].mxu0
  %739 = vmatprep.mubr.f32.mxu0 0.0
  %740 = vmatmul.mubr.f32.gmra.mrb[0].mxu0 %v637
  %v741 = vpop.f32.mrb[0].mxu0
  %v742 = vadd.f32 %v584, %v741
  %v743 = vpop.f32.mrb[0].mxu0
  %744 = vmatprep.mubr.f32.mxu0 0.0
  %745 = vmatmul.mubr.f32.gmra.mrb[0].mxu0 %v640
  %v746 = vpop.f32.mrb[0].mxu0
  %v747 = vadd.f32 %v584, %v746
  %v748 = vpop.f32.mrb[0].mxu0
  %749 = vdwg.mxu0
  %750 = vst.msk [vmem:[%s6] sm:$0xff] %vm59, %v712
  %751 = vst.msk [vmem:[%s6 + $0x8] sm:$0xff] %vm59, %v717
  %752 = vst.msk [vmem:[%s6 + $0x10] sm:$0xff] %vm59, %v722
  %753 = vst.msk [vmem:[%s6 + $0x18] sm:$0xff] %vm59, %v727
  %754 = vst.msk [vmem:[%s6 + $0x20] sm:$0xff] %vm59, %v732
  %755 = vst.msk [vmem:[%s6 + $0x28] sm:$0xff] %vm59, %v737
  %756 = vst.msk [vmem:[%s6 + $0x30] sm:$0xff] %vm59, %v742
  %757 = vst.msk [vmem:[%s6 + $0x38] sm:$0xff] %vm59, %v747
  // Predicated region
  $region26: #{tpu_custom_call.1} parent=0 // pred_check
    _
  $region27: #{tpu_custom_call.1} parent=0 // pred_check_branch
    %759 = sbr.rel (0) target = $region29
  $region28: #{tpu_custom_call.1} parent=0 // pred_region
    _
  $region29: #{tpu_custom_call.1} parent=0 // pred_fallthru
    _
  // Predicated region
  $region30: #{tpu_custom_call.1} parent=0 // pred_check
    _
  $region31: #{tpu_custom_call.1} parent=0 // pred_check_branch
    %761 = sbr.rel (0) target = $region33
  $region32: #{tpu_custom_call.1} parent=0 // pred_region
    _
  $region33: #{tpu_custom_call.1} parent=0 // pred_fallthru
    _

</llo_original>
